<compile_context>
chip_gen: v5e
topology: v5e:2x2
jax: 0.10.0
libtpu: 0.0.40
codegen_flags: <defaults>
</compile_context>

<pallas_src>
import math
import functools

import jax
import jax.numpy as jnp
from jax import lax
from jax.experimental import pallas as pl
from jax.experimental.pallas import tpu as pltpu


def _mha_kernel(x_ref, wq_ref, wk_ref, wv_ref, wh_ref, bh_ref, o_ref, acc_ref,
                *, d_k, mxu_dtype):
    """Grid step (i, h): head `h`'s full contribution for batch-tile `i`.

    x_ref  : (b_tile, seq, d_in)      input block (resident across head axis)
    wq_ref : (1, d_in, d_k)           head-h columns of W_q (scale pre-folded)
    wk_ref : (1, d_in, d_k)           head-h columns of W_k
    wv_ref : (1, d_in, d_k)           head-h columns of W_v
    wh_ref : (1, d_k, d_model)        head-h rows of W_h
    bh_ref : (1, d_model) f32         output-projection bias
    o_ref  : (b_tile, seq, d_model)   output block (written on the last head)
    acc_ref: (b_tile*seq, d_model) f32  output-projection accumulator scratch
    """
    h = pl.program_id(1)
    b_tile, seq, d_in = x_ref.shape
    m = b_tile * seq

    @pl.when(h == 0)
    def _():
        acc_ref[...] = jnp.zeros_like(acc_ref)

    # ---- per-head Q/K/V projections: bf16 operands, f32 MXU accumulation ---
    # Three separate (m, d_in) x (d_in, d_k) matmuls so every result is born
    # at lane offset 0 -- no sub-128-lane slicing / relayouts in the kernel.
    x2 = x_ref[...].reshape(m, d_in).astype(mxu_dtype)
    q = jnp.dot(x2, wq_ref[0], preferred_element_type=jnp.float32)
    k = jnp.dot(x2, wk_ref[0], preferred_element_type=jnp.float32)
    v = jnp.dot(x2, wv_ref[0], preferred_element_type=jnp.float32)

    qb = q.reshape(b_tile, seq, d_k).astype(mxu_dtype)
    kb = k.reshape(b_tile, seq, d_k).astype(mxu_dtype)
    vb = v.reshape(b_tile, seq, d_k).astype(mxu_dtype)

    # ---- scaled-dot-product attention (scale folded into W_q) --------------
    # scores[b, q, k] = sum_d Q[b, q, d] * K[b, k, d]  (bf16 in, f32 acc)
    s = lax.dot_general(qb, kb, (((2,), (2,)), ((0,), (0,))),
                        preferred_element_type=jnp.float32)

    # numerically-stable softmax over the key axis, f32 VPU; EUP reciprocal
    s = s - jnp.max(s, axis=-1, keepdims=True)
    p = jnp.exp(s)
    a = p * pl.reciprocal(jnp.sum(p, axis=-1, keepdims=True), approx=True)

    # H_h[b, q, d] = sum_k A[b, q, k] * V[b, k, d]  (bf16 operands)
    hh = lax.dot_general(a.astype(mxu_dtype), vb, (((2,), (1,)), ((0,), (0,))),
                         preferred_element_type=jnp.float32)

    # ---- output projection, accumulated over heads --------------------------
    #   H_cat @ W_h  ==  sum_h  H_h @ W_h[h*d_k:(h+1)*d_k, :]
    acc_ref[...] += jnp.dot(hh.reshape(m, d_k).astype(mxu_dtype), wh_ref[0],
                            preferred_element_type=jnp.float32)

    @pl.when(h == pl.num_programs(1) - 1)
    def _():
        out = acc_ref[...] + bh_ref[...]
        o_ref[...] = out.reshape(b_tile, seq, o_ref.shape[-1]).astype(o_ref.dtype)


def _pick_batch_tile(batch, seq, d_in, d_model, d_k, x_bytes, *,
                     vmem_budget=20 << 20, min_rows=256, max_rows=2048):
    """Batch tile: big enough to feed the MXU M-dim, small enough to fit a
    conservative VMEM budget (counting the f32 seq^2 score tensor), and
    leaving >= 2 grid steps along batch when possible (v7x megacore)."""
    def cost(bt):
        m = bt * seq
        c = 2 * bt * seq * d_in * x_bytes        # double-buffered X block
        c += 2 * bt * seq * d_model * x_bytes    # double-buffered output block
        c += m * d_model * 4                     # f32 accumulator scratch
        c += 2 * m * seq * 4                     # f32 scores + probs live values
        c += 3 * m * d_k * 4                     # per-head Q/K/V f32 values
        return c

    divisors = [d for d in range(1, batch + 1) if batch % d == 0]
    feasible = [d for d in divisors if cost(d) <= vmem_budget and d * seq <= max_rows]
    if not feasible:
        return 1
    reaching = [d for d in feasible if d * seq >= min_rows]
    if reaching:
        return min(reaching)            # smallest tile that already fills the MXU M-dim
    bt = max(feasible)                  # otherwise the biggest tile that fits ...
    if bt == batch and batch > 1:       # ... but keep >= 2 batch steps for megacore
        smaller = [d for d in feasible if d < batch]
        if smaller:
            bt = max(smaller)
    return bt


def multi_headed_attention(X, params, *, num_heads, batch_first=False,
                           mxu_dtype=jnp.bfloat16, batch_tile=None):
    """Pallas forward pass mirroring MultiHeadedAttention.forward.

    X: (seq, batch, d_in) if batch_first=False, else (batch, seq, d_in).
       (>3-D inputs flattened over trailing dims; 2-D inputs get batch=1,
        matching the PyTorch module's warning branches.)
    params: (W_q, W_k, W_v, W_h, b_h) with weights stored (in, out) so that
       y = x @ W (+ b) matches torch.nn.Linear.
    """
    wq, wk, wv, wh, bh = params
    d_in, d_model = wq.shape
    assert d_model % num_heads == 0, (d_model, num_heads)
    d_k = d_model // num_heads

    # --- replicate the PyTorch shape fix-ups --------------------------------
    if X.ndim > 3:
        X = X.reshape(X.shape[0], X.shape[1], -1)
    if X.ndim == 2:
        X = X.reshape(X.shape[0], 1, X.shape[1])
    if not batch_first:
        X = jnp.transpose(X, (1, 0, 2))
    batch, seq, _ = X.shape

    if batch_tile is None:
        batch_tile = _pick_batch_tile(batch, seq, d_in, d_model, d_k,
                                      X.dtype.itemsize)
    assert batch % batch_tile == 0, (batch, batch_tile)
    m = batch_tile * seq

    cdtype = X.dtype if mxu_dtype is None else mxu_dtype
    scale = 1.0 / math.sqrt(d_k)

    # Head-blocked weights prepared once in the wrapper so every in-kernel
    # operand is a full, lane-aligned block (no d_k-granularity lane slicing):
    #   wX_h[h] = W_X[:, h*d_k:(h+1)*d_k],   wh_h[h] = W_h[h*d_k:(h+1)*d_k, :]
    def head_cols(w):
        return jnp.transpose(w.reshape(d_in, num_heads, d_k), (1, 0, 2))

    wq_h = head_cols(wq * scale).astype(cdtype)      # (H, d_in, d_k), scale folded
    wk_h = head_cols(wk).astype(cdtype)
    wv_h = head_cols(wv).astype(cdtype)
    wh_h = wh.reshape(num_heads, d_k, d_model).astype(cdtype)
    bh2d = bh.reshape(1, d_model).astype(jnp.float32)

    kernel = functools.partial(_mha_kernel, d_k=d_k, mxu_dtype=cdtype)

    # Explicit VMEM budget (matters on v7x's 64 MiB): blocks + scratch + slack.
    wbytes = jnp.dtype(cdtype).itemsize
    est = (2 * batch_tile * seq * d_in * X.dtype.itemsize
           + 2 * batch_tile * seq * d_model * X.dtype.itemsize
           + m * d_model * 4 + 2 * m * seq * 4 + 3 * m * d_k * 4
           + 2 * (3 * d_in * d_k + d_k * d_model) * wbytes
           + d_model * 4)
    vmem_limit = int(min(64 << 20, max(32 << 20, 2 * est)))

    out = pl.pallas_call(
        kernel,
        out_shape=jax.ShapeDtypeStruct((batch, seq, d_model), X.dtype),
        grid_spec=pltpu.PrefetchScalarGridSpec(
            num_scalar_prefetch=0,
            # heads innermost: output block / accumulator stay resident
            grid=(batch // batch_tile, num_heads),
            in_specs=[
                pl.BlockSpec((batch_tile, seq, d_in), lambda i, h: (i, 0, 0)),  # X
                pl.BlockSpec((1, d_in, d_k), lambda i, h: (h, 0, 0)),           # W_q[h]
                pl.BlockSpec((1, d_in, d_k), lambda i, h: (h, 0, 0)),           # W_k[h]
                pl.BlockSpec((1, d_in, d_k), lambda i, h: (h, 0, 0)),           # W_v[h]
                pl.BlockSpec((1, d_k, d_model), lambda i, h: (h, 0, 0)),        # W_h[h]
                pl.BlockSpec((1, d_model), lambda i, h: (0, 0)),                # b_h
            ],
            out_specs=pl.BlockSpec((batch_tile, seq, d_model),
                                   lambda i, h: (i, 0, 0)),
            scratch_shapes=[pltpu.VMEM((m, d_model), jnp.float32)],
        ),
        compiler_params=pltpu.CompilerParams(
            dimension_semantics=("parallel", "arbitrary"),
            vmem_limit_bytes=vmem_limit),
    )(X, wq_h, wk_h, wv_h, wh_h, bh2d)

    if not batch_first:
        out = jnp.transpose(out, (1, 0, 2))
    return out


def _reference(X, params, *, num_heads, batch_first=False):
    """Plain-JAX float32 reference of the PyTorch forward for verification."""
    wq, wk, wv, wh, bh = params
    d_model = wq.shape[1]
    d_k = d_model // num_heads
    if not batch_first:
        X = jnp.transpose(X, (1, 0, 2))
    b, s, _ = X.shape

    def split(x):
        return jnp.transpose(x.reshape(b, s, num_heads, d_k), (0, 2, 1, 3))

    Q, K, V = split(X @ wq), split(X @ wk), split(X @ wv)
    scores = jnp.einsum("bhqd,bhkd->bhqk", Q / math.sqrt(d_k), K)
    A = jax.nn.softmax(scores, axis=-1)
    H = jnp.einsum("bhqk,bhkd->bhqd", A, V)
    H = jnp.transpose(H, (0, 2, 1, 3)).reshape(b, s, d_model)
    H = H @ wh + bh
    if not batch_first:
        H = jnp.transpose(H, (1, 0, 2))
    return H


if __name__ == "__main__":
    # Small, module-consistent shapes.
    d_model = 32
    num_heads = 4
    seq = 8
    batch = 2
    d_in = d_model          # d_input defaults to d_model

    key = jax.random.PRNGKey(0)
    kx, k1, k2, k3, k4, k5 = jax.random.split(key, 6)

    # Deterministic synthetic parameters (torch.nn.Linear-style init range).
    scale_in = 1.0 / math.sqrt(d_in)
    wq = jax.random.uniform(k1, (d_in, d_model), jnp.float32, -scale_in, scale_in)
    wk = jax.random.uniform(k2, (d_in, d_model), jnp.float32, -scale_in, scale_in)
    wv = jax.random.uniform(k3, (d_in, d_model), jnp.float32, -scale_in, scale_in)
    scale_h = 1.0 / math.sqrt(d_model)
    wh = jax.random.uniform(k4, (d_model, d_model), jnp.float32, -scale_h, scale_h)
    bh = jax.random.uniform(k5, (d_model,), jnp.float32, -scale_h, scale_h)
    params = (wq, wk, wv, wh, bh)

    # batch_first=False convention: X is (seq, batch, d_in).
    X = jax.random.normal(kx, (seq, batch, d_in), jnp.float32)

    out = multi_headed_attention(X, params, num_heads=num_heads,
                                 batch_first=False)
    out = jax.block_until_ready(out)

    ref = _reference(X, params, num_heads=num_heads, batch_first=False)
    assert out.shape == (seq, batch, d_model), out.shape
    # bf16 MXU operands + approx reciprocal => looser tolerance vs f32 ref.
    assert jnp.allclose(out, ref, atol=2e-2, rtol=2e-2), float(
        jnp.max(jnp.abs(out - ref)))

    print("KERNEL_OK")
</pallas_src>

<mosaic_0001>
module attributes {stable_mosaic.version = 11 : i64} {
  func.func @_mha_kernel(%arg0: i32, %arg1: i32, %arg2: memref<1x8x32xf32, #tpu.memory_space<vmem>>, %arg3: memref<1x32x8xbf16, #tpu.memory_space<vmem>>, %arg4: memref<1x32x8xbf16, #tpu.memory_space<vmem>>, %arg5: memref<1x32x8xbf16, #tpu.memory_space<vmem>>, %arg6: memref<1x8x32xbf16, #tpu.memory_space<vmem>>, %arg7: memref<1x32xf32, #tpu.memory_space<vmem>>, %arg8: memref<1x8x32xf32, #tpu.memory_space<vmem>>, %arg9: memref<8x32xf32, #tpu.memory_space<vmem>>) attributes {dimension_semantics = [#tpu.dimension_semantics<parallel>, #tpu.dimension_semantics<arbitrary>], iteration_bounds = array<i64: 2, 4>, scalar_prefetch = 0 : i64, scratch_operands = 1 : i64, tpu.core_type = #tpu.core_type<tc>, window_params = [{transform_indices = @transform_0, window_bounds = array<i64: 1, 8, 32>}, {transform_indices = @transform_1, window_bounds = array<i64: 1, 32, 8>}, {transform_indices = @transform_2, window_bounds = array<i64: 1, 32, 8>}, {transform_indices = @transform_3, window_bounds = array<i64: 1, 32, 8>}, {transform_indices = @transform_4, window_bounds = array<i64: 1, 8, 32>}, {pipeline_mode = #tpu.pipeline_mode<synchronous>, transform_indices = @transform_5, window_bounds = array<i64: 1, 32>}, {transform_indices = @transform_6, window_bounds = array<i64: 1, 8, 32>}]} {
    %c0_i32 = arith.constant 0 : i32
    %0 = arith.cmpi eq, %arg1, %c0_i32 : i32
    %1 = arith.extui %0 : i1 to i32
    %c0_i32_0 = arith.constant 0 : i32
    %2 = arith.cmpi ne, %1, %c0_i32_0 : i32
    scf.if %2 {
      %cst_27 = arith.constant 0.000000e+00 : f32
      %45 = vector.broadcast %cst_27 : f32 to vector<8x32xf32>
      %c0_28 = arith.constant 0 : index
      %c0_29 = arith.constant 0 : index
      %46 = vector.load %arg9[%c0_28, %c0_29] : memref<8x32xf32, #tpu.memory_space<vmem>>, vector<8x32xf32>
      tpu.vector_store %arg9[%c0_28, %c0_29], %45 {strides = array<i32>} : memref<8x32xf32, #tpu.memory_space<vmem>>, vector<8x32xf32>,
    } else {
    }
    %c0 = arith.constant 0 : index
    %c0_1 = arith.constant 0 : index
    %c0_2 = arith.constant 0 : index
    %3 = vector.load %arg2[%c0, %c0_1, %c0_2] : memref<1x8x32xf32, #tpu.memory_space<vmem>>, vector<1x8x32xf32>
    %4 = vector.shape_cast %3 : vector<1x8x32xf32> to vector<8x32xf32>
    %5 = arith.truncf %4 : vector<8x32xf32> to vector<8x32xbf16>
    %c0_3 = arith.constant 0 : index
    %c0_4 = arith.constant 0 : index
    %c0_5 = arith.constant 0 : index
    %6 = vector.load %arg3[%c0_3, %c0_4, %c0_5] : memref<1x32x8xbf16, #tpu.memory_space<vmem>>, vector<1x32x8xbf16>
    %7 = vector.shape_cast %6 : vector<1x32x8xbf16> to vector<32x8xbf16>
    %cst = arith.constant dense<0.000000e+00> : vector<8x8xf32>
    %8 = tpu.matmul %5, %7, %cst {dimension_numbers = #tpu.dot_dimension_numbers<[1], [0], [0], [1], [0, 0, 1, 1], [], []>} : vector<8x32xbf16>, vector<32x8xbf16>, vector<8x8xf32> -> vector<8x8xf32>
    %c0_6 = arith.constant 0 : index
    %c0_7 = arith.constant 0 : index
    %c0_8 = arith.constant 0 : index
    %9 = vector.load %arg4[%c0_6, %c0_7, %c0_8] : memref<1x32x8xbf16, #tpu.memory_space<vmem>>, vector<1x32x8xbf16>
    %10 = vector.shape_cast %9 : vector<1x32x8xbf16> to vector<32x8xbf16>
    %cst_9 = arith.constant dense<0.000000e+00> : vector<8x8xf32>
    %11 = tpu.matmul %5, %10, %cst_9 {dimension_numbers = #tpu.dot_dimension_numbers<[1], [0], [0], [1], [0, 0, 1, 1], [], []>} : vector<8x32xbf16>, vector<32x8xbf16>, vector<8x8xf32> -> vector<8x8xf32>
    %c0_10 = arith.constant 0 : index
    %c0_11 = arith.constant 0 : index
    %c0_12 = arith.constant 0 : index
    %12 = vector.load %arg5[%c0_10, %c0_11, %c0_12] : memref<1x32x8xbf16, #tpu.memory_space<vmem>>, vector<1x32x8xbf16>
    %13 = vector.shape_cast %12 : vector<1x32x8xbf16> to vector<32x8xbf16>
    %cst_13 = arith.constant dense<0.000000e+00> : vector<8x8xf32>
    %14 = tpu.matmul %5, %13, %cst_13 {dimension_numbers = #tpu.dot_dimension_numbers<[1], [0], [0], [1], [0, 0, 1, 1], [], []>} : vector<8x32xbf16>, vector<32x8xbf16>, vector<8x8xf32> -> vector<8x8xf32>
    %15 = vector.shape_cast %8 : vector<8x8xf32> to vector<1x8x8xf32>
    %16 = arith.truncf %15 : vector<1x8x8xf32> to vector<1x8x8xbf16>
    %17 = vector.shape_cast %11 : vector<8x8xf32> to vector<1x8x8xf32>
    %18 = arith.truncf %17 : vector<1x8x8xf32> to vector<1x8x8xbf16>
    %19 = vector.shape_cast %14 : vector<8x8xf32> to vector<1x8x8xf32>
    %20 = arith.truncf %19 : vector<1x8x8xf32> to vector<1x8x8xbf16>
    %cst_14 = arith.constant dense<0.000000e+00> : vector<1x8x8xf32>
    %21 = tpu.matmul %16, %18, %cst_14 {dimension_numbers = #tpu.dot_dimension_numbers<[2], [2], [1], [1], [0, 0, 0, 1, 1, 1], [0], [0]>} : vector<1x8x8xbf16>, vector<1x8x8xbf16>, vector<1x8x8xf32> -> vector<1x8x8xf32>
    %cst_15 = arith.constant dense<0xFF800000> : vector<1x8xf32>
    %22 = vector.multi_reduction <maximumf>, %21, %cst_15 [2] : vector<1x8x8xf32> to vector<1x8xf32>
    %23 = vector.shape_cast %22 : vector<1x8xf32> to vector<1x8x1xf32>
    %24 = vector.broadcast %23 : vector<1x8x1xf32> to vector<1x8x8xf32>
    %25 = arith.subf %21, %24 : vector<1x8x8xf32>
    %26 = math.exp %25 : vector<1x8x8xf32>
    %cst_16 = arith.constant dense<0.000000e+00> : vector<1x8xf32>
    %27 = vector.multi_reduction <add>, %26, %cst_16 [2] : vector<1x8x8xf32> to vector<1x8xf32>
    %28 = vector.shape_cast %27 : vector<1x8xf32> to vector<1x8x1xf32>
    %29 = tpu.reciprocal %28 {approx = true} : vector<1x8x1xf32> -> vector<1x8x1xf32>
    %30 = vector.broadcast %29 : vector<1x8x1xf32> to vector<1x8x8xf32>
    %31 = arith.mulf %26, %30 : vector<1x8x8xf32>
    %32 = arith.truncf %31 : vector<1x8x8xf32> to vector<1x8x8xbf16>
    %cst_17 = arith.constant dense<0.000000e+00> : vector<1x8x8xf32>
    %33 = tpu.matmul %32, %20, %cst_17 {dimension_numbers = #tpu.dot_dimension_numbers<[2], [1], [1], [2], [0, 0, 0, 1, 1, 2], [0], [0]>} : vector<1x8x8xbf16>, vector<1x8x8xbf16>, vector<1x8x8xf32> -> vector<1x8x8xf32>
    %c0_18 = arith.constant 0 : index
    %c0_19 = arith.constant 0 : index
    %34 = vector.load %arg9[%c0_18, %c0_19] : memref<8x32xf32, #tpu.memory_space<vmem>>, vector<8x32xf32>
    %35 = vector.shape_cast %33 : vector<1x8x8xf32> to vector<8x8xf32>
    %36 = arith.truncf %35 : vector<8x8xf32> to vector<8x8xbf16>
    %c0_20 = arith.constant 0 : index
    %c0_21 = arith.constant 0 : index
    %c0_22 = arith.constant 0 : index
    %37 = vector.load %arg6[%c0_20, %c0_21, %c0_22] : memref<1x8x32xbf16, #tpu.memory_space<vmem>>, vector<1x8x32xbf16>
    %38 = vector.shape_cast %37 : vector<1x8x32xbf16> to vector<8x32xbf16>
    %cst_23 = arith.constant dense<0.000000e+00> : vector<8x32xf32>
    %39 = tpu.matmul %36, %38, %cst_23 {dimension_numbers = #tpu.dot_dimension_numbers<[1], [0], [0], [1], [0, 0, 1, 1], [], []>} : vector<8x8xbf16>, vector<8x32xbf16>, vector<8x32xf32> -> vector<8x32xf32>
    %40 = arith.addf %34, %39 : vector<8x32xf32>
    %c0_24 = arith.constant 0 : index
    %c0_25 = arith.constant 0 : index
    %41 = vector.load %arg9[%c0_24, %c0_25] : memref<8x32xf32, #tpu.memory_space<vmem>>, vector<8x32xf32>
    tpu.vector_store %arg9[%c0_24, %c0_25], %40 {strides = array<i32>} : memref<8x32xf32, #tpu.memory_space<vmem>>, vector<8x32xf32>,
    %c3_i32 = arith.constant 3 : i32
    %42 = arith.cmpi eq, %arg1, %c3_i32 : i32
    %43 = arith.extui %42 : i1 to i32
    %c0_i32_26 = arith.constant 0 : i32
    %44 = arith.cmpi ne, %43, %c0_i32_26 : i32
    scf.if %44 {
      %c0_27 = arith.constant 0 : index
      %c0_28 = arith.constant 0 : index
      %45 = vector.load %arg9[%c0_27, %c0_28] : memref<8x32xf32, #tpu.memory_space<vmem>>, vector<8x32xf32>
      %c0_29 = arith.constant 0 : index
      %c0_30 = arith.constant 0 : index
      %46 = vector.load %arg7[%c0_29, %c0_30] : memref<1x32xf32, #tpu.memory_space<vmem>>, vector<1x32xf32>
      %47 = vector.broadcast %46 : vector<1x32xf32> to vector<8x32xf32>
      %48 = arith.addf %45, %47 : vector<8x32xf32>
      %49 = vector.shape_cast %48 : vector<8x32xf32> to vector<1x8x32xf32>
      %c0_31 = arith.constant 0 : index
      %c0_32 = arith.constant 0 : index
      %c0_33 = arith.constant 0 : index
      %50 = vector.load %arg8[%c0_31, %c0_32, %c0_33] : memref<1x8x32xf32, #tpu.memory_space<vmem>>, vector<1x8x32xf32>
      tpu.vector_store %arg8[%c0_31, %c0_32, %c0_33], %49 {strides = array<i32>} : memref<1x8x32xf32, #tpu.memory_space<vmem>>, vector<1x8x32xf32>,
    } else {
    }
    return
  }
  func.func @transform_0(%arg0: i32, %arg1: i32) -> (i32, i32, i32) {
    %c0_i32 = arith.constant 0 : i32
    %c0_i32_0 = arith.constant 0 : i32
    %c0_i32_1 = arith.constant 0 : i32
    return %arg0, %c0_i32, %c0_i32_0 : i32, i32, i32
  }
  func.func @transform_1(%arg0: i32, %arg1: i32) -> (i32, i32, i32) {
    %c0_i32 = arith.constant 0 : i32
    %c0_i32_0 = arith.constant 0 : i32
    %c0_i32_1 = arith.constant 0 : i32
    return %arg1, %c0_i32, %c0_i32_0 : i32, i32, i32
  }
  func.func @transform_2(%arg0: i32, %arg1: i32) -> (i32, i32, i32) {
    %c0_i32 = arith.constant 0 : i32
    %c0_i32_0 = arith.constant 0 : i32
    %c0_i32_1 = arith.constant 0 : i32
    return %arg1, %c0_i32, %c0_i32_0 : i32, i32, i32
  }
  func.func @transform_3(%arg0: i32, %arg1: i32) -> (i32, i32, i32) {
    %c0_i32 = arith.constant 0 : i32
    %c0_i32_0 = arith.constant 0 : i32
    %c0_i32_1 = arith.constant 0 : i32
    return %arg1, %c0_i32, %c0_i32_0 : i32, i32, i32
  }
  func.func @transform_4(%arg0: i32, %arg1: i32) -> (i32, i32, i32) {
    %c0_i32 = arith.constant 0 : i32
    %c0_i32_0 = arith.constant 0 : i32
    %c0_i32_1 = arith.constant 0 : i32
    return %arg1, %c0_i32, %c0_i32_0 : i32, i32, i32
  }
  func.func @transform_5(%arg0: i32, %arg1: i32) -> (i32, i32) {
    %c0_i32 = arith.constant 0 : i32
    %c0_i32_0 = arith.constant 0 : i32
    %c0_i32_1 = arith.constant 0 : i32
    return %c0_i32, %c0_i32_0 : i32, i32
  }
  func.func @transform_6(%arg0: i32, %arg1: i32) -> (i32, i32, i32) {
    %c0_i32 = arith.constant 0 : i32
    %c0_i32_0 = arith.constant 0 : i32
    %c0_i32_1 = arith.constant 0 : i32
    return %arg0, %c0_i32, %c0_i32_0 : i32, i32, i32
  }
}

</mosaic_0001>

<llo_original>
// kernel: tpu_custom_call.1
$region0: #{tpu_custom_call.1}
  #allocation0 [shape = 'u32[]', space=smem, size = 0x4, offset = 0x4, fixed_abs, tag = 'smem constant byte address 0x4 - core index']
  #allocation1 [shape = 'u32[72,128]{1,0:T(1,128)}', space=vmem, size = 0x9000, scoped, tag = 'internal scratch']
  #allocation2 [shape = 'f32[8,32]{1,0:T(8,128)}', space=vmem, size = 0x1000, scoped, tag = 'scratch operand']
  %s0 = inlined_call_operand.vmem [shape: f32[2,8,32], index: 0, kind: input, shape index: {}]
  %s1 = inlined_call_operand.vmem [shape: bf16[4,32,8], index: 1, kind: input, shape index: {}]
  %s2 = inlined_call_operand.vmem [shape: bf16[4,32,8], index: 2, kind: input, shape index: {}]
  %s3 = inlined_call_operand.vmem [shape: bf16[4,32,8], index: 3, kind: input, shape index: {}]
  %s4 = inlined_call_operand.vmem [shape: bf16[4,8,32], index: 4, kind: input, shape index: {}]
  %s5 = inlined_call_operand.vmem [shape: f32[1,32], index: 5, kind: input, shape index: {}]
  %s6 = inlined_call_operand.hbm [shape: f32[2,8,32], index: 6, kind: output, shape index: {}]
  %s7 = sld [smem:[#allocation0]]
  $region65: #{tpu_custom_call.1} parent=0
    _
  %s9 = ssub.s32 1, %s7
  %s10 = scalar_select 0, %s9, %s7
  $region1: #{tpu_custom_call.1} parent=0
    #allocation3 [shape = 'u8[8192]{0}', space=vmem, size = 0x2000, scoped, tag = 'output window, operand 0']
    #allocation4 [shape = 's32[2]{0}', space=sflag, size = 0x8, scoped, tag = 'scoped memory for tpu_custom_call.1']
    %11 = vsyncpa [#allocation4], 0
    %s12 = scalar_lea.sflag [#allocation4], 1
    %13 = vsyncpa %s12, 0
    loop: start=0, step=1, limit=10
    $region2: #{tpu_custom_call.1} parent=1 // loop_pre_header
      _
    $region3: #{tpu_custom_call.1} parent=1 // loop_header
      %s15 = sphi 0, %s19
      %p16 = scmp.ge.s32.totalorder %s15, 10
      %s22 = sphi 0, %s34
      %s23 = sphi 0, %s30
      %s24 = sphi 0, %s22
      %s25 = sphi 0, %s23
      %s26 = sphi 0, %s24
      %s27 = sphi 0, %s25
      %s37 = sphi 0, %s39
      %s40 = sphi 0, %s37
      %s41 = sphi 0, %s40
      %s57 = sphi 0, %s41
      %s63 = sphi 0, %s65
      %s66 = sphi 0, %s63
      %s67 = sphi 0, %s66
      %s83 = sphi 0, %s67
      %s89 = sphi 0, %s91
      %s92 = sphi 0, %s89
      %s93 = sphi 0, %s92
      %s109 = sphi 0, %s93
      %s115 = sphi 0, %s117
      %s118 = sphi 0, %s115
      %s119 = sphi 0, %s118
      %s135 = sphi 0, %s119
      %s141 = sphi 0, %s143
      %s144 = sphi 0, %s141
      %s145 = sphi 0, %s144
      %s161 = sphi 0, %s145
      %s165 = sphi 0, %s165
      %s167 = sphi 0, %s165
      %s168 = sphi 0, %s167
      %s182 = sphi 0, %s168
      %s188 = sphi 0, %s190
      %s191 = sphi 0, %s188
      %s192 = sphi 0, %s191
      %s208 = sphi 0, %s192
    $region4: #{tpu_custom_call.1} parent=1 // loop_header_branch
      %18 = sbr.rel (%p16) target = $region8
    $region5: #{tpu_custom_call.1} parent=1 // loop_body
      %s20 = ssub.s32 %s15, 1
      %s21 = ssub.s32 %s15, 2
      %s28 = sadd.s32 1, %s23
      %p29 = scmp.ge.s32.totalorder %s28, 4
      %s30 = scalar_select %p29, 0, %s28
      %s31 = sadd.s32 1, %s22
      %s32 = scalar_select %p29, %s31, %s22
      %p33 = scmp.ge.s32.totalorder %s32, 2
      %s34 = scalar_select %p33, 0, %s32
      %s35 = ssub.s32 %s22, %s34
      %p36 = scmp.eq.s32.totalorder %s35, 0
      %s38 = sadd.s32 %s37, 1
      %s39 = scalar_select %p36, %s37, %s38
      %p42 = pneg %p36
      %p43 = scmp.eq.s32.totalorder %s15, 7
      %p44 = por %p42, %p43
      %p45 = scmp.ne.s32.totalorder %s37, %s40
      %p46 = scmp.eq.s32.totalorder %s15, 0
      %p47 = por %p45, %p46
      %p48 = scmp.ne.s32.totalorder %s37, %s40
      %p49 = scmp.eq.s32.totalorder %s20, 7
      %p50 = por %p48, %p49
      %p51 = scmp.ne.s32.totalorder %s40, %s41
      %p52 = scmp.eq.s32.totalorder %s20, 0
      %p53 = por %p51, %p52
      %p54 = scmp.ne.s32.totalorder %s40, %s41
      %p55 = scmp.eq.s32.totalorder %s21, 7
      %p56 = por %p54, %p55
      %p58 = scmp.ne.s32.totalorder %s41, %s57
      %p59 = scmp.eq.s32.totalorder %s21, 0
      %p60 = por %p58, %p59
      %s61 = ssub.s32 %s23, %s30
      %p62 = scmp.eq.s32.totalorder %s61, 0
      %s64 = sadd.s32 %s63, 1
      %s65 = scalar_select %p62, %s63, %s64
      %p68 = pneg %p62
      %p69 = scmp.eq.s32.totalorder %s15, 7
      %p70 = por %p68, %p69
      %p71 = scmp.ne.s32.totalorder %s63, %s66
      %p72 = scmp.eq.s32.totalorder %s15, 0
      %p73 = por %p71, %p72
      %p74 = scmp.ne.s32.totalorder %s63, %s66
      %p75 = scmp.eq.s32.totalorder %s20, 7
      %p76 = por %p74, %p75
      %p77 = scmp.ne.s32.totalorder %s66, %s67
      %p78 = scmp.eq.s32.totalorder %s20, 0
      %p79 = por %p77, %p78
      %p80 = scmp.ne.s32.totalorder %s66, %s67
      %p81 = scmp.eq.s32.totalorder %s21, 7
      %p82 = por %p80, %p81
      %p84 = scmp.ne.s32.totalorder %s67, %s83
      %p85 = scmp.eq.s32.totalorder %s21, 0
      %p86 = por %p84, %p85
      %s87 = ssub.s32 %s23, %s30
      %p88 = scmp.eq.s32.totalorder %s87, 0
      %s90 = sadd.s32 %s89, 1
      %s91 = scalar_select %p88, %s89, %s90
      %p94 = pneg %p88
      %p95 = scmp.eq.s32.totalorder %s15, 7
      %p96 = por %p94, %p95
      %p97 = scmp.ne.s32.totalorder %s89, %s92
      %p98 = scmp.eq.s32.totalorder %s15, 0
      %p99 = por %p97, %p98
      %p100 = scmp.ne.s32.totalorder %s89, %s92
      %p101 = scmp.eq.s32.totalorder %s20, 7
      %p102 = por %p100, %p101
      %p103 = scmp.ne.s32.totalorder %s92, %s93
      %p104 = scmp.eq.s32.totalorder %s20, 0
      %p105 = por %p103, %p104
      %p106 = scmp.ne.s32.totalorder %s92, %s93
      %p107 = scmp.eq.s32.totalorder %s21, 7
      %p108 = por %p106, %p107
      %p110 = scmp.ne.s32.totalorder %s93, %s109
      %p111 = scmp.eq.s32.totalorder %s21, 0
      %p112 = por %p110, %p111
      %s113 = ssub.s32 %s23, %s30
      %p114 = scmp.eq.s32.totalorder %s113, 0
      %s116 = sadd.s32 %s115, 1
      %s117 = scalar_select %p114, %s115, %s116
      %p120 = pneg %p114
      %p121 = scmp.eq.s32.totalorder %s15, 7
      %p122 = por %p120, %p121
      %p123 = scmp.ne.s32.totalorder %s115, %s118
      %p124 = scmp.eq.s32.totalorder %s15, 0
      %p125 = por %p123, %p124
      %p126 = scmp.ne.s32.totalorder %s115, %s118
      %p127 = scmp.eq.s32.totalorder %s20, 7
      %p128 = por %p126, %p127
      %p129 = scmp.ne.s32.totalorder %s118, %s119
      %p130 = scmp.eq.s32.totalorder %s20, 0
      %p131 = por %p129, %p130
      %p132 = scmp.ne.s32.totalorder %s118, %s119
      %p133 = scmp.eq.s32.totalorder %s21, 7
      %p134 = por %p132, %p133
      %p136 = scmp.ne.s32.totalorder %s119, %s135
      %p137 = scmp.eq.s32.totalorder %s21, 0
      %p138 = por %p136, %p137
      %s139 = ssub.s32 %s23, %s30
      %p140 = scmp.eq.s32.totalorder %s139, 0
      %s142 = sadd.s32 %s141, 1
      %s143 = scalar_select %p140, %s141, %s142
      %p146 = pneg %p140
      %p147 = scmp.eq.s32.totalorder %s15, 7
      %p148 = por %p146, %p147
      %p149 = scmp.ne.s32.totalorder %s141, %s144
      %p150 = scmp.eq.s32.totalorder %s15, 0
      %p151 = por %p149, %p150
      %p152 = scmp.ne.s32.totalorder %s141, %s144
      %p153 = scmp.eq.s32.totalorder %s20, 7
      %p154 = por %p152, %p153
      %p155 = scmp.ne.s32.totalorder %s144, %s145
      %p156 = scmp.eq.s32.totalorder %s20, 0
      %p157 = por %p155, %p156
      %p158 = scmp.ne.s32.totalorder %s144, %s145
      %p159 = scmp.eq.s32.totalorder %s21, 7
      %p160 = por %p158, %p159
      %p162 = scmp.ne.s32.totalorder %s145, %s161
      %p163 = scmp.eq.s32.totalorder %s21, 0
      %p164 = por %p162, %p163
      %s166 = sadd.s32 %s165, 1
      %p169 = scmp.eq.s32.totalorder %s15, 7
      %p170 = scmp.ne.s32.totalorder %s165, %s167
      %p171 = scmp.eq.s32.totalorder %s15, 0
      %p172 = por %p170, %p171
      %p173 = scmp.ne.s32.totalorder %s165, %s167
      %p174 = scmp.eq.s32.totalorder %s20, 7
      %p175 = por %p173, %p174
      %p176 = scmp.ne.s32.totalorder %s167, %s168
      %p177 = scmp.eq.s32.totalorder %s20, 0
      %p178 = por %p176, %p177
      %p179 = scmp.ne.s32.totalorder %s167, %s168
      %p180 = scmp.eq.s32.totalorder %s21, 7
      %p181 = por %p179, %p180
      %p183 = scmp.ne.s32.totalorder %s168, %s182
      %p184 = scmp.eq.s32.totalorder %s21, 0
      %p185 = por %p183, %p184
      %s186 = ssub.s32 %s22, %s34
      %p187 = scmp.eq.s32.totalorder %s186, 0
      %s189 = sadd.s32 %s188, 1
      %s190 = scalar_select %p187, %s188, %s189
      %p193 = pneg %p187
      %p194 = scmp.eq.s32.totalorder %s15, 7
      %p195 = por %p193, %p194
      %p196 = scmp.ne.s32.totalorder %s188, %s191
      %p197 = scmp.eq.s32.totalorder %s15, 0
      %p198 = por %p196, %p197
      %p199 = scmp.ne.s32.totalorder %s188, %s191
      %p200 = scmp.eq.s32.totalorder %s20, 7
      %p201 = por %p199, %p200
      %p202 = scmp.ne.s32.totalorder %s191, %s192
      %p203 = scmp.eq.s32.totalorder %s20, 0
      %p204 = por %p202, %p203
      %p205 = scmp.ne.s32.totalorder %s191, %s192
      %p206 = scmp.eq.s32.totalorder %s21, 7
      %p207 = por %p205, %p206
      %p209 = scmp.ne.s32.totalorder %s192, %s208
      %p210 = scmp.eq.s32.totalorder %s21, 0
      %p211 = por %p209, %p210
      %p212 = scmp.le.s32.totalorder 1, %s15
      %p213 = scmp.lt.s32.totalorder %s15, 9
      %p214 = pnand %p212, %p213
      %p215 = pneg %p214
      // Predicated region
      $region9: #{tpu_custom_call.1} parent=5 // pred_check
        _
      $region10: #{tpu_custom_call.1} parent=5 // pred_check_branch
        %217 = sbr.rel (%p214) target = $region12
      $region11: #{tpu_custom_call.1} parent=5 // pred_region
        %s218 = ssub.s32 %s15, 1
        // Predicated region
        $region13: #{tpu_custom_call.1} parent=11 // pred_check
          %p219 = pneg %p178
        $region14: #{tpu_custom_call.1} parent=11 // pred_check_branch
          %221 = sbr.rel (%p219) target = $region16
        $region15: #{tpu_custom_call.1} parent=11 // pred_region
          _
        $region16: #{tpu_custom_call.1} parent=11 // pred_fallthru
          _
      $region12: #{tpu_custom_call.1} parent=5 // pred_fallthru
        _
      %p222 = scmp.lt.s32.totalorder %s15, 8
      // Predicated region
      $region17: #{tpu_custom_call.1} parent=5 // pred_check
        %p223 = pneg %p222
      $region18: #{tpu_custom_call.1} parent=5 // pred_check_branch
        %225 = sbr.rel (%p223) target = $region20
      $region19: #{tpu_custom_call.1} parent=5 // pred_region
        // Predicated region
        $region21: #{tpu_custom_call.1} parent=19 // pred_check
          %p226 = pneg %p47
        $region22: #{tpu_custom_call.1} parent=19 // pred_check_branch
          %228 = sbr.rel (%p226) target = $region24
        $region23: #{tpu_custom_call.1} parent=19 // pred_region
          %p229 = scmp.lt.s32.totalorder %s22, 1
          %s230 = scalar_select %p229, %s22, 1
          %s231 = smul.addr %s230, 8
          %s232 = scalar_lea.vmem %s0, %s231
        $region24: #{tpu_custom_call.1} parent=19 // pred_fallthru
          _
        // Predicated region
        $region25: #{tpu_custom_call.1} parent=19 // pred_check
          %p233 = pneg %p73
        $region26: #{tpu_custom_call.1} parent=19 // pred_check_branch
          %235 = sbr.rel (%p233) target = $region28
        $region27: #{tpu_custom_call.1} parent=19 // pred_region
          %p236 = scmp.lt.s32.totalorder %s23, 3
          %s237 = scalar_select %p236, %s23, 3
          %s238 = smul.addr %s237, 4
          %s239 = smul.addr %s238, 4
          %s240 = scalar_lea.vmem %s1, %s239
        $region28: #{tpu_custom_call.1} parent=19 // pred_fallthru
          _
        // Predicated region
        $region29: #{tpu_custom_call.1} parent=19 // pred_check
          %p241 = pneg %p99
        $region30: #{tpu_custom_call.1} parent=19 // pred_check_branch
          %243 = sbr.rel (%p241) target = $region32
        $region31: #{tpu_custom_call.1} parent=19 // pred_region
          %p244 = scmp.lt.s32.totalorder %s23, 3
          %s245 = scalar_select %p244, %s23, 3
          %s246 = smul.addr %s245, 4
          %s247 = smul.addr %s246, 4
          %s248 = scalar_lea.vmem %s2, %s247
        $region32: #{tpu_custom_call.1} parent=19 // pred_fallthru
          _
        // Predicated region
        $region33: #{tpu_custom_call.1} parent=19 // pred_check
          %p249 = pneg %p125
        $region34: #{tpu_custom_call.1} parent=19 // pred_check_branch
          %251 = sbr.rel (%p249) target = $region36
        $region35: #{tpu_custom_call.1} parent=19 // pred_region
          %p252 = scmp.lt.s32.totalorder %s23, 3
          %s253 = scalar_select %p252, %s23, 3
          %s254 = smul.addr %s253, 4
          %s255 = smul.addr %s254, 4
          %s256 = scalar_lea.vmem %s3, %s255
        $region36: #{tpu_custom_call.1} parent=19 // pred_fallthru
          _
        // Predicated region
        $region37: #{tpu_custom_call.1} parent=19 // pred_check
          %p257 = pneg %p151
        $region38: #{tpu_custom_call.1} parent=19 // pred_check_branch
          %259 = sbr.rel (%p257) target = $region40
        $region39: #{tpu_custom_call.1} parent=19 // pred_region
          %p260 = scmp.lt.s32.totalorder %s23, 3
          %s261 = scalar_select %p260, %s23, 3
          %s262 = smul.addr %s261, 4
          %s263 = scalar_lea.vmem %s4, %s262
        $region40: #{tpu_custom_call.1} parent=19 // pred_fallthru
          _
      $region20: #{tpu_custom_call.1} parent=5 // pred_fallthru
        _
      %p264 = scmp.le.s32.totalorder 1, %s15
      %p265 = scmp.lt.s32.totalorder %s15, 9
      %p266 = pnand %p264, %p265
      %p267 = pneg %p266
      // Predicated region
      $region41: #{tpu_custom_call.1} parent=5 // pred_check
        _
      $region42: #{tpu_custom_call.1} parent=5 // pred_check_branch
        %269 = sbr.rel (%p266) target = $region44
      $region43: #{tpu_custom_call.1} parent=5 // pred_region
        %s270 = ssub.s32 %s15, 1
        %p271 = scmp.lt.s32.totalorder %s24, 1
        %s272 = scalar_select %p271, %s24, 1
        %s273 = smul.addr %s272, 8
        %s274 = scalar_lea.vmem %s0, %s273
        %p275 = pneg %p53
        %p276 = pneg %p50
        %p277 = scmp.lt.s32.totalorder %s25, 3
        %s278 = scalar_select %p277, %s25, 3
        %s279 = smul.addr %s278, 4
        %s280 = smul.addr %s279, 4
        %s281 = scalar_lea.vmem %s1, %s280
        %p282 = pneg %p79
        %p283 = pneg %p76
        %p284 = scmp.lt.s32.totalorder %s25, 3
        %s285 = scalar_select %p284, %s25, 3
        %s286 = smul.addr %s285, 4
        %s287 = smul.addr %s286, 4
        %s288 = scalar_lea.vmem %s2, %s287
        %p289 = pneg %p105
        %p290 = pneg %p102
        %p291 = scmp.lt.s32.totalorder %s25, 3
        %s292 = scalar_select %p291, %s25, 3
        %s293 = smul.addr %s292, 4
        %s294 = smul.addr %s293, 4
        %s295 = scalar_lea.vmem %s3, %s294
        %p296 = pneg %p131
        %p297 = pneg %p128
        %p298 = scmp.lt.s32.totalorder %s25, 3
        %s299 = scalar_select %p298, %s25, 3
        %s300 = smul.addr %s299, 4
        %s301 = scalar_lea.vmem %s4, %s300
        %p302 = pneg %p157
        %p303 = pneg %p154
        %p304 = pneg %p178
        %p305 = pneg %p175
        %p306 = pneg %p204
        %p307 = pneg %p201
        %s308 = sand.u32 %s191, 1
        %s309 = scalar_lea.sflag [#allocation4], %s308
        %s310 = sand.u32 %s191, 1
        %s311 = smul.addr %s310, 8
        %s312 = scalar_lea.vmem [#allocation3], %s311
        %p313 = scmp.lt.s32.totalorder %s24, 1
        %s314 = scalar_select %p313, %s24, 1
        %s315 = smul.addr %s314, 8
        %s316 = scalar_lea.vmem %s0, %s315
        %p317 = scmp.lt.s32.totalorder %s25, 3
        %s318 = scalar_select %p317, %s25, 3
        %s319 = smul.addr %s318, 4
        %s320 = smul.addr %s319, 4
        %s321 = scalar_lea.vmem %s1, %s320
        %p322 = scmp.lt.s32.totalorder %s25, 3
        %s323 = scalar_select %p322, %s25, 3
        %s324 = smul.addr %s323, 4
        %s325 = smul.addr %s324, 4
        %s326 = scalar_lea.vmem %s2, %s325
        %p327 = scmp.lt.s32.totalorder %s25, 3
        %s328 = scalar_select %p327, %s25, 3
        %s329 = smul.addr %s328, 4
        %s330 = smul.addr %s329, 4
        %s331 = scalar_lea.vmem %s3, %s330
        %p332 = scmp.lt.s32.totalorder %s25, 3
        %s333 = scalar_select %p332, %s25, 3
        %s334 = smul.addr %s333, 4
        %s335 = scalar_lea.vmem %s4, %s334
        %p337 = scmp.eq.s32.totalorder %s25, 0
        // Predicated region
        $region45: #{tpu_custom_call.1} parent=43 // pred_check
          %p338 = pneg %p337
        $region46: #{tpu_custom_call.1} parent=43 // pred_check_branch
          %340 = sbr.rel (%p338) target = $region48
        $region47: #{tpu_custom_call.1} parent=43 // pred_region
          %vm341 = vcmask 261120
          %342 = vst.msk [vmem:[#allocation2] sm:$0xff] %vm341, 0.0
        $region48: #{tpu_custom_call.1} parent=43 // pred_fallthru
          _
        %v343 = vld [vmem:[%s316] sm:$0xff]
        %v344 = vpack.c.bf16 %v343, %v343
        %v345 = vld [vmem:[%s321] sm:$0xf]
        %v346 = vld [vmem:[%s321 + $0x4] sm:$0xf]
        %v347 = vld [vmem:[%s321 + $0x8] sm:$0xf]
        %v348 = vld [vmem:[%s321 + $0xc] sm:$0xf]
        %v353 = vunpack.c.l.b16 %v345
        %v354 = vunpack.c.l.b16 %v346
        %v355 = vunpack.c.l.b16 %v347
        %v356 = vunpack.c.l.b16 %v348
        %v357 = vpack.c.b16 %v354, %v353
        %v358 = vpack.c.b16 %v356, %v355
        %vm361 = vcmask 261120
        %v363 = vsel %vm361, %v344, 0
        %365 = vmatpush.bf16.msra.mxu0 0
        %366 = vmatpush.bf16.msra.mxu0 0
        %367 = vmatpush.bf16.msra.mxu0 0
        %368 = vmatpush.bf16.msra.mxu0 0
        %369 = vmatpush.bf16.msra.mxu0 0
        %370 = vmatpush.bf16.msra.mxu0 0
        %371 = vmatpush.bf16.msra.mxu0 %v358
        %372 = vmatpush.bf16.msra.mxu0 %v357
        %373 = vmatmul.bf16.gmra.mxu0 %v363
        %v374 = vpop.f32.mrf.mxu0
        %v375 = vadd.f32 0.0, %v374
        %v376 = vpop.f32.mrf.mxu0
        %377 = vdwg.mxu0
        %v378 = vld [vmem:[%s326] sm:$0xf]
        %v379 = vld [vmem:[%s326 + $0x4] sm:$0xf]
        %v380 = vld [vmem:[%s326 + $0x8] sm:$0xf]
        %v381 = vld [vmem:[%s326 + $0xc] sm:$0xf]
        %v386 = vunpack.c.l.b16 %v378
        %v387 = vunpack.c.l.b16 %v379
        %v388 = vunpack.c.l.b16 %v380
        %v389 = vunpack.c.l.b16 %v381
        %v390 = vpack.c.b16 %v387, %v386
        %v391 = vpack.c.b16 %v389, %v388
        %394 = vmatpush.bf16.msra.mxu0 0
        %395 = vmatpush.bf16.msra.mxu0 0
        %396 = vmatpush.bf16.msra.mxu0 0
        %397 = vmatpush.bf16.msra.mxu0 0
        %398 = vmatpush.bf16.msra.mxu0 0
        %399 = vmatpush.bf16.msra.mxu0 0
        %400 = vmatpush.bf16.msra.mxu0 %v391
        %401 = vmatpush.bf16.msra.mxu0 %v390
        %402 = vmatmul.bf16.gmra.mxu0 %v363
        %v403 = vpop.f32.mrf.mxu0
        %v404 = vadd.f32 0.0, %v403
        %v405 = vpop.f32.mrf.mxu0
        %406 = vdwg.mxu0
        %v407 = vld [vmem:[%s331] sm:$0xf]
        %v408 = vld [vmem:[%s331 + $0x4] sm:$0xf]
        %v409 = vld [vmem:[%s331 + $0x8] sm:$0xf]
        %v410 = vld [vmem:[%s331 + $0xc] sm:$0xf]
        %v415 = vunpack.c.l.b16 %v407
        %v416 = vunpack.c.l.b16 %v408
        %v417 = vunpack.c.l.b16 %v409
        %v418 = vunpack.c.l.b16 %v410
        %v419 = vpack.c.b16 %v416, %v415
        %v420 = vpack.c.b16 %v418, %v417
        %423 = vmatpush.bf16.msra.mxu0 0
        %424 = vmatpush.bf16.msra.mxu0 0
        %425 = vmatpush.bf16.msra.mxu0 0
        %426 = vmatpush.bf16.msra.mxu0 0
        %427 = vmatpush.bf16.msra.mxu0 0
        %428 = vmatpush.bf16.msra.mxu0 0
        %429 = vmatpush.bf16.msra.mxu0 %v420
        %430 = vmatpush.bf16.msra.mxu0 %v419
        %431 = vmatmul.bf16.gmra.mxu0 %v363
        %v432 = vpop.f32.mrf.mxu0
        %v433 = vadd.f32 0.0, %v432
        %v434 = vpop.f32.mrf.mxu0
        %435 = vdwg.mxu0
        %v436 = vpack.c.bf16 %v375, %v375
        %v437 = vpack.c.bf16 %v404, %v404
        %v438 = vpack.c.bf16 %v433, %v433
        %vm439 = vcmask 64512
        %v441 = vsel %vm439, %v436, 0
        %v444 = vsel %vm439, %v437, 0
        %446 = vmatpush.bf16.xpose.msra.mxu0 0
        %447 = vmatpush.bf16.xpose.msra.mxu0 0
        %448 = vmatpush.bf16.xpose.msra.mxu0 0
        %449 = vmatpush.bf16.xpose.msra.mxu0 0
        %450 = vmatpush.bf16.xpose.msra.mxu0 0
        %451 = vmatpush.bf16.xpose.msra.mxu0 0
        %452 = vmatpush.bf16.xpose.msra.mxu0 0
        %453 = vmatpush.bf16.xpose.msra.mxu0 %v444
        %454 = vmatmul.bf16.gmra.mxu0 %v441
        %v455 = vpop.f32.mrf.mxu0
        %v456 = vadd.f32 0.0, %v455
        %v457 = vpop.f32.mrf.mxu0
        %458 = vdwg.mxu0
        %v459 = vsel %vm439, %v456, -inf
        %460 = vmax.xlane.f32.xlu0 %v459
        %v461 = vpop.xlane.xlu0 %460
        %v462 = vsub.f32 %v456, %v461
        %v463 = vmul.f32 %v462, 1.442695
        %v464 = vpow.pop %v463
        %v465 = vsel %vm439, %v464, 0.0
        %466 = vadd.xlane.f32.xlu0 %v465
        %v467 = vpop.xlane.xlu0 %466
        %v468 = vrcp.pop %v467
        %v469 = vmul.f32 %v464, %v468
        %v470 = vpack.c.bf16 %v469, %v469
        %v472 = vsel %vm439, %v470, 0
        %vm474 = vcmask 1043456
        %v476 = vsel %vm474, %v438, 0
        %478 = vmatpush.bf16.msra.mxu0 0
        %479 = vmatpush.bf16.msra.mxu0 0
        %480 = vmatpush.bf16.msra.mxu0 0
        %481 = vmatpush.bf16.msra.mxu0 0
        %482 = vmatpush.bf16.msra.mxu0 0
        %483 = vmatpush.bf16.msra.mxu0 0
        %484 = vmatpush.bf16.msra.mxu0 0
        %485 = vmatpush.bf16.msra.mxu0 %v476
        %486 = vmatmul.bf16.gmra.mxu0 %v472
        %v487 = vpop.f32.mrf.mxu0
        %v488 = vadd.f32 0.0, %v487
        %v489 = vpop.f32.mrf.mxu0
        %490 = vdwg.mxu0
        %v491 = vld [vmem:[#allocation2] sm:$0xff]
        %v492 = vpack.c.bf16 %v488, %v488
        %v493 = vld [vmem:[%s335] sm:$0xf]
        %v495 = vsel %vm439, %v492, 0
        %v498 = vsel %vm474, %v493, 0
        %500 = vmatpush.bf16.msra.mxu0 0
        %501 = vmatpush.bf16.msra.mxu0 0
        %502 = vmatpush.bf16.msra.mxu0 0
        %503 = vmatpush.bf16.msra.mxu0 0
        %504 = vmatpush.bf16.msra.mxu0 0
        %505 = vmatpush.bf16.msra.mxu0 0
        %506 = vmatpush.bf16.msra.mxu0 0
        %507 = vmatpush.bf16.msra.mxu0 %v498
        %508 = vmatmul.bf16.gmra.mxu0 %v495
        %v509 = vpop.f32.mrf.mxu0
        %v510 = vadd.f32 0.0, %v509
        %v511 = vpop.f32.mrf.mxu0
        %512 = vdwg.mxu0
        %v513 = vadd.f32 %v491, %v510
        %514 = vst.msk [vmem:[#allocation2] sm:$0xff] %vm361, %v513
        %p515 = scmp.eq.s32.totalorder %s25, 3
        // Predicated region
        $region49: #{tpu_custom_call.1} parent=43 // pred_check
          %p516 = pneg %p515
        $region50: #{tpu_custom_call.1} parent=43 // pred_check_branch
          %518 = sbr.rel (%p516) target = $region52
        $region51: #{tpu_custom_call.1} parent=43 // pred_region
          %v519 = vld [vmem:[#allocation2] sm:$0xff]
          %v520 = vld [vmem:[%s5] sm:$0x1]
          %v522 = vperm.slane %v520, 0
          %v524 = vadd.f32 %v519, %v522
          %525 = vst.msk [vmem:[%s312] sm:$0xff] %vm361, %v524
        $region52: #{tpu_custom_call.1} parent=43 // pred_fallthru
          _
        %s526 = sand.u32 %s191, 1
        %s527 = scalar_lea.sflag [#allocation4], %s526
        %s528 = sand.u32 %s191, 1
        %s529 = smul.addr %s528, 8
        %s530 = scalar_lea.vmem [#allocation3], %s529
        // Predicated region
        $region53: #{tpu_custom_call.1} parent=43 // pred_check
          %p531 = pneg %p201
        $region54: #{tpu_custom_call.1} parent=43 // pred_check_branch
          %533 = sbr.rel (%p531) target = $region56
        $region55: #{tpu_custom_call.1} parent=43 // pred_region
          %535 = vsyncadd %s527, 0
          %s536 = smul.addr %s24, 8
          %s537 = scalar_lea.hbm %s6, %s536
          %s539 = sshll.u32 %s530, 4
          %s540 = int_to_ptr.vmem [resolvable:$true] %s539
          %s541 = sshll.u32 %s537, 4
          %s542 = int_to_ptr.hbm [resolvable:$true] %s541
          %544 = dma.vmem_to_hbm [thread:$0]  %s540, 128, %s542, %s527
        $region56: #{tpu_custom_call.1} parent=43 // pred_fallthru
          _
      $region44: #{tpu_custom_call.1} parent=5 // pred_fallthru
        _
      %p545 = scmp.le.s32.totalorder 2, %s15
      // Predicated region
      $region57: #{tpu_custom_call.1} parent=5 // pred_check
        %p546 = pneg %p545
      $region58: #{tpu_custom_call.1} parent=5 // pred_check_branch
        %548 = sbr.rel (%p546) target = $region60
      $region59: #{tpu_custom_call.1} parent=5 // pred_region
        %s549 = ssub.s32 %s15, 2
        // Predicated region
        $region61: #{tpu_custom_call.1} parent=59 // pred_check
          %p550 = pneg %p207
        $region62: #{tpu_custom_call.1} parent=59 // pred_check_branch
          %552 = sbr.rel (%p550) target = $region64
        $region63: #{tpu_custom_call.1} parent=59 // pred_region
          %s553 = sand.u32 %s192, 1
          %s554 = scalar_lea.sflag [#allocation4], %s553
          %s555 = sand.u32 %s192, 1
          %s556 = smul.addr %s555, 8
          %s557 = scalar_lea.vmem [#allocation3], %s556
          %559 = dma.done %s554, 128
        $region64: #{tpu_custom_call.1} parent=59 // pred_fallthru
          _
      $region60: #{tpu_custom_call.1} parent=5 // pred_fallthru
        _
    $region6: #{tpu_custom_call.1} parent=1 // loop_footer
      %s19 = sadd.s32 1, %s15
    $region7: #{tpu_custom_call.1} parent=1 // loop_footer_branch
      %14 = sbr.rel target = $region3
    $region8: #{tpu_custom_call.1} parent=1 // loop_exit
      _
    %560 = vsyncpa [#allocation4], 1
    %s561 = scalar_lea.sflag [#allocation4], 1
    %562 = vsyncpa %s561, 1

</llo_original>
